<compile_context>
chip_gen: v7x
topology: tpu7x:2x2x1
jax: 0.10.0
libtpu: 0.0.40
codegen_flags: <defaults>
</compile_context>

<pallas_src>
import jax
import jax.numpy as jnp
from jax.experimental import pallas as pl
from jax.experimental.pallas import tpu as pltpu

_EPS = 1e-5
_LANE = 128
_MAX_TILE_C = 512
_VMEM_TILE_BUDGET = 8 * 1024 * 1024  # bytes for double-buffered in+out strips


def _bn1d_kernel(x_ref, w_ref, b_ref, o_ref):
    # One (N, TILE_C) channel strip per grid step.  Per-channel statistics only
    # reduce over the batch axis (sublanes), so channel tiles are independent.
    x = x_ref[...].astype(jnp.float32)
    inv_n = 1.0 / x.shape[0]  # full batch is resident in this block
    mean = jnp.sum(x, axis=0, keepdims=True) * inv_n             # (1, TILE_C)
    diff = x - mean
    var = jnp.sum(diff * diff, axis=0, keepdims=True) * inv_n    # biased var (training BN)
    inv_std = jax.lax.rsqrt(var + _EPS)
    # Fold normalization + affine into a single multiply-add per element.
    scale = inv_std * w_ref[...]                                 # (1, TILE_C)
    shift = b_ref[...] - mean * scale                            # (1, TILE_C)
    o_ref[...] = (x * scale + shift).astype(o_ref.dtype)


def _round_up(v, m):
    return ((v + m - 1) // m) * m


def _pick_tile_c(n_rows, c_pad, itemsize):
    """Largest 128-multiple divisor of c_pad that keeps the double-buffered
    input+output strips (2 bufs x 2 arrays x N x T x itemsize) under budget."""
    cap = _VMEM_TILE_BUDGET // max(1, 4 * n_rows * itemsize)
    cap = max(_LANE, (cap // _LANE) * _LANE)
    cap = min(cap, _MAX_TILE_C, c_pad)
    tile = _LANE
    t = _LANE
    while t <= cap:
        if c_pad % t == 0:
            tile = t
        t += _LANE
    return tile


def _batchnorm1d_pallas(x, weight_row, bias_row):
    """Training-mode BatchNorm1d on (N, C).  weight_row/bias_row are the
    pre-cast, lane-padded (1, C_pad) per-channel affine parameters."""
    n, c = x.shape
    c_pad = weight_row.shape[1]
    # Pad channels to a 128-multiple so stores are lane-dense.  Padded channels
    # see x=0, w=0, b=0 -> output 0, and are sliced off afterwards.
    x_in = x if c_pad == c else jnp.pad(x, ((0, 0), (0, c_pad - c)))
    itemsize = jnp.dtype(x.dtype).itemsize
    tile_c = _pick_tile_c(n, c_pad, itemsize)
    grid = (c_pad // tile_c,)

    cost = pl.CostEstimate(
        flops=7 * n * c_pad,
        transcendentals=c_pad,  # rsqrt per channel
        bytes_accessed=2 * n * c_pad * itemsize + 2 * c_pad * 4,
    )

    out = pl.pallas_call(
        _bn1d_kernel,
        out_shape=jax.ShapeDtypeStruct((n, c_pad), x.dtype),
        grid_spec=pltpu.PrefetchScalarGridSpec(
            num_scalar_prefetch=0,
            grid=grid,
            in_specs=[
                pl.BlockSpec((n, tile_c), lambda j: (0, j)),
                pl.BlockSpec((1, tile_c), lambda j: (0, j)),
                pl.BlockSpec((1, tile_c), lambda j: (0, j)),
            ],
            out_specs=pl.BlockSpec((n, tile_c), lambda j: (0, j)),
        ),
        compiler_params=pltpu.CompilerParams(
            dimension_semantics=("parallel",),       # shard channel tiles across TCs (v7x)
            vmem_limit_bytes=32 * 1024 * 1024,       # headroom; safe on v5e/v6e/v7x
        ),
        cost_estimate=cost,
    )(x_in, weight_row, bias_row)

    return out if c_pad == c else out[:, :c]


batchnorm1d_pallas = jax.jit(_batchnorm1d_pallas)


class SwitchableBatchNorm1d:
    """JAX/Pallas port of the slimmable SwitchableBatchNorm1d module."""

    def __init__(self, num_features_list, key):
        self.num_features_list = list(num_features_list)
        self.num_features = max(num_features_list)
        self.params = []   # raw (nf,) weight/bias, PyTorch-layout
        self._rows = []    # pre-cast, lane-padded (1, C_pad) f32 rows (hot path)
        for i, nf in enumerate(num_features_list):
            kw, kb = jax.random.split(jax.random.fold_in(key, i))
            # PyTorch init is weight=1, bias=0; perturb deterministically so the
            # affine path is actually exercised.
            w = 1.0 + 0.1 * jax.random.normal(kw, (nf,), jnp.float32)
            b = 0.1 * jax.random.normal(kb, (nf,), jnp.float32)
            self.params.append((w, b))
            c_pad = _round_up(nf, _LANE)
            w_row = jnp.zeros((1, c_pad), jnp.float32).at[0, :nf].set(w)
            b_row = jnp.zeros((1, c_pad), jnp.float32).at[0, :nf].set(b)
            self._rows.append((w_row, b_row))
        # TODO(synk): running_mean/running_var tracking (used only in eval mode)
        # is not updated here; forward implements training-mode batch stats.

    def __call__(self, x, idx):
        # idx selects which BN's parameters to use (static, like nn.ModuleList).
        assert x.shape[1] == self.num_features_list[idx]
        w_row, b_row = self._rows[idx]
        return batchnorm1d_pallas(x, w_row, b_row)


def _reference_bn(x, w, b):
    x32 = x.astype(jnp.float32)
    mean = jnp.mean(x32, axis=0, keepdims=True)
    var = jnp.mean((x32 - mean) ** 2, axis=0, keepdims=True)
    return ((x32 - mean) * jax.lax.rsqrt(var + _EPS) * w[None, :] + b[None, :]).astype(x.dtype)


if __name__ == "__main__":
    key = jax.random.PRNGKey(0)
    num_features_list = [16, 32]
    batch = 8

    module = SwitchableBatchNorm1d(num_features_list, jax.random.fold_in(key, 123))

    ok = True
    for idx, nf in enumerate(num_features_list):
        kx = jax.random.fold_in(key, 1000 + idx)
        x = jax.random.normal(kx, (batch, nf), jnp.float32)
        y = jax.block_until_ready(module(x, idx))
        y_ref = _reference_bn(x, *module.params[idx])
        if y.shape != x.shape or not jnp.allclose(y, y_ref, atol=1e-4, rtol=1e-4):
            ok = False

    if ok:
        print("KERNEL_OK")
</pallas_src>

<mosaic_0001>
module attributes {stable_mosaic.version = 11 : i64} {
  func.func @_bn1d_kernel(%arg0: i32, %arg1: memref<8x128xf32, #tpu.memory_space<vmem>>, %arg2: memref<1x128xf32, #tpu.memory_space<vmem>>, %arg3: memref<1x128xf32, #tpu.memory_space<vmem>>, %arg4: memref<8x128xf32, #tpu.memory_space<vmem>>) attributes {dimension_semantics = [#tpu.dimension_semantics<parallel>], iteration_bounds = array<i64: 1>, scalar_prefetch = 0 : i64, scratch_operands = 0 : i64, tpu.core_type = #tpu.core_type<tc>, window_params = [{transform_indices = @transform_0, window_bounds = array<i64: 8, 128>}, {transform_indices = @transform_1, window_bounds = array<i64: 1, 128>}, {transform_indices = @transform_2, window_bounds = array<i64: 1, 128>}, {transform_indices = @transform_3, window_bounds = array<i64: 8, 128>}]} {
    %c0 = arith.constant 0 : index
    %c0_0 = arith.constant 0 : index
    %0 = vector.load %arg1[%c0, %c0_0] : memref<8x128xf32, #tpu.memory_space<vmem>>, vector<8x128xf32>
    %cst = arith.constant dense<0.000000e+00> : vector<128xf32>
    %1 = vector.multi_reduction <add>, %0, %cst [0] : vector<8x128xf32> to vector<128xf32>
    %2 = vector.shape_cast %1 : vector<128xf32> to vector<1x128xf32>
    %cst_1 = arith.constant 1.250000e-01 : f32
    %3 = vector.broadcast %cst_1 : f32 to vector<1x128xf32>
    %4 = arith.mulf %2, %3 : vector<1x128xf32>
    %5 = vector.broadcast %4 : vector<1x128xf32> to vector<8x128xf32>
    %6 = arith.subf %0, %5 : vector<8x128xf32>
    %7 = arith.mulf %6, %6 : vector<8x128xf32>
    %cst_2 = arith.constant dense<0.000000e+00> : vector<128xf32>
    %8 = vector.multi_reduction <add>, %7, %cst_2 [0] : vector<8x128xf32> to vector<128xf32>
    %9 = vector.shape_cast %8 : vector<128xf32> to vector<1x128xf32>
    %cst_3 = arith.constant 1.250000e-01 : f32
    %10 = vector.broadcast %cst_3 : f32 to vector<1x128xf32>
    %11 = arith.mulf %9, %10 : vector<1x128xf32>
    %cst_4 = arith.constant 9.99999974E-6 : f32
    %12 = vector.broadcast %cst_4 : f32 to vector<1x128xf32>
    %13 = arith.addf %11, %12 : vector<1x128xf32>
    %14 = math.rsqrt %13 : vector<1x128xf32>
    %c0_5 = arith.constant 0 : index
    %c0_6 = arith.constant 0 : index
    %15 = vector.load %arg2[%c0_5, %c0_6] : memref<1x128xf32, #tpu.memory_space<vmem>>, vector<1x128xf32>
    %16 = arith.mulf %14, %15 : vector<1x128xf32>
    %c0_7 = arith.constant 0 : index
    %c0_8 = arith.constant 0 : index
    %17 = vector.load %arg3[%c0_7, %c0_8] : memref<1x128xf32, #tpu.memory_space<vmem>>, vector<1x128xf32>
    %18 = arith.mulf %4, %16 : vector<1x128xf32>
    %19 = arith.subf %17, %18 : vector<1x128xf32>
    %20 = vector.broadcast %16 : vector<1x128xf32> to vector<8x128xf32>
    %21 = arith.mulf %0, %20 : vector<8x128xf32>
    %22 = vector.broadcast %19 : vector<1x128xf32> to vector<8x128xf32>
    %23 = arith.addf %21, %22 : vector<8x128xf32>
    %c0_9 = arith.constant 0 : index
    %c0_10 = arith.constant 0 : index
    %24 = vector.load %arg4[%c0_9, %c0_10] : memref<8x128xf32, #tpu.memory_space<vmem>>, vector<8x128xf32>
    tpu.vector_store %arg4[%c0_9, %c0_10], %23 {strides = array<i32>} : memref<8x128xf32, #tpu.memory_space<vmem>>, vector<8x128xf32>,
    return
  }
  func.func @transform_0(%arg0: i32) -> (i32, i32) {
    %c0_i32 = arith.constant 0 : i32
    %c0_i32_0 = arith.constant 0 : i32
    return %c0_i32, %arg0 : i32, i32
  }
  func.func @transform_1(%arg0: i32) -> (i32, i32) {
    %c0_i32 = arith.constant 0 : i32
    %c0_i32_0 = arith.constant 0 : i32
    return %c0_i32, %arg0 : i32, i32
  }
  func.func @transform_2(%arg0: i32) -> (i32, i32) {
    %c0_i32 = arith.constant 0 : i32
    %c0_i32_0 = arith.constant 0 : i32
    return %c0_i32, %arg0 : i32, i32
  }
  func.func @transform_3(%arg0: i32) -> (i32, i32) {
    %c0_i32 = arith.constant 0 : i32
    %c0_i32_0 = arith.constant 0 : i32
    return %c0_i32, %arg0 : i32, i32
  }
}

</mosaic_0001>

<llo_original>
// kernel: _batchnorm1d_pallas.1
$region0: #{_batchnorm1d_pallas.1}
  #allocation0 [shape = 'u32[]', space=smem, size = 0x4, offset = 0x4, fixed_abs, tag = 'smem constant byte address 0x4 - core index']
  #allocation1 [shape = 'u32[144,128]{1,0:T(1,128)}', space=vmem, size = 0x12000, scoped, tag = 'internal scratch']
  %s0 = inlined_call_operand.vmem [shape: f32[8,128], index: 0, kind: input, shape index: {}]
  %s1 = inlined_call_operand.vmem [shape: f32[1,128], index: 1, kind: input, shape index: {}]
  %s2 = inlined_call_operand.vmem [shape: f32[1,128], index: 2, kind: input, shape index: {}]
  %s3 = inlined_call_operand.hbm [shape: f32[8,128], index: 3, kind: output, shape index: {}]
  %s4 = sld [smem:[#allocation0]]
  $region22: #{_batchnorm1d_pallas.1} parent=0
    _
  %s6 = ssub.s32 1, %s4
  %s7 = scalar_select 0, %s6, %s4
  $region1: #{_batchnorm1d_pallas.1} parent=0
    #allocation2 [shape = 'u8[4096]{0}', space=vmem, size = 0x1000, scoped, tag = 'output window, operand 0, single buffered']
    #allocation3 [shape = 's32[1]{0}', space=sflag, size = 0x4, scoped, tag = 'scoped memory for _batchnorm1d_pallas.1']
    %8 = vsyncpa [#allocation3], 0
    // Predicated region
    $region2: #{_batchnorm1d_pallas.1} parent=1 // pred_check
      _
    $region3: #{_batchnorm1d_pallas.1} parent=1 // pred_check_branch
      %10 = sbr.rel (0) target = $region5
    $region4: #{_batchnorm1d_pallas.1} parent=1 // pred_region
      _
    $region5: #{_batchnorm1d_pallas.1} parent=1 // pred_fallthru
      _
    // Predicated region
    $region6: #{_batchnorm1d_pallas.1} parent=1 // pred_check
      _
    $region7: #{_batchnorm1d_pallas.1} parent=1 // pred_check_branch
      %12 = sbr.rel (0) target = $region9
    $region8: #{_batchnorm1d_pallas.1} parent=1 // pred_region
      _
    $region9: #{_batchnorm1d_pallas.1} parent=1 // pred_fallthru
      _
    // Predicated region
    $region10: #{_batchnorm1d_pallas.1} parent=1 // pred_check
      _
    $region11: #{_batchnorm1d_pallas.1} parent=1 // pred_check_branch
      %14 = sbr.rel (0) target = $region13
    $region12: #{_batchnorm1d_pallas.1} parent=1 // pred_region
      _
    $region13: #{_batchnorm1d_pallas.1} parent=1 // pred_fallthru
      _
    %v15 = vld [vmem:[%s0] sm:$0xff]
    %v16 = vrot.slane %v15, 4
    %v17 = vadd.f32 %v15, %v16
    %v18 = vrot.slane %v17, 2
    %v19 = vadd.f32 %v17, %v18
    %v20 = vrot.slane %v19, 1
    %v21 = vadd.f32 %v19, %v20
    %v22 = vmul.f32 %v21, 0.125
    %v23 = vsub.f32 %v15, %v22
    %v24 = vmul.f32 %v23, %v23
    %v25 = vrot.slane %v24, 4
    %v26 = vadd.f32 %v24, %v25
    %v27 = vrot.slane %v26, 2
    %v28 = vadd.f32 %v26, %v27
    %v29 = vrot.slane %v28, 1
    %v30 = vadd.f32 %v28, %v29
    %v31 = vmul.f32 %v30, 0.125
    %v32 = vadd.f32 %v31, 1e-05
    %v33 = vrsqrt.pop %v32
    %v34 = vld [vmem:[%s1] sm:$0x1]
    %v35 = vmul.f32 %v33, %v34
    %v36 = vld [vmem:[%s2] sm:$0x1]
    %v37 = vmul.f32 %v22, %v35
    %v38 = vsub.f32 %v36, %v37
    %v39 = vlaneseq
    %v40 = vshrl.u32 %v39, 7
    %v41 = vsub.s32 0, %v40
    %v42 = vrot.slane %v35, %v41
    %v43 = vmul.f32 %v15, %v42
    %v45 = vlaneseq
    %v46 = vshrl.u32 %v45, 7
    %v47 = vsub.s32 0, %v46
    %v48 = vrot.slane %v38, %v47
    %v50 = vadd.f32 %v43, %v48
    %51 = vst [vmem:[#allocation2] sm:$0xff] %v50
    // Predicated region
    $region14: #{_batchnorm1d_pallas.1} parent=1 // pred_check
      _
    $region15: #{_batchnorm1d_pallas.1} parent=1 // pred_check_branch
      %53 = sbr.rel (0) target = $region17
    $region16: #{_batchnorm1d_pallas.1} parent=1 // pred_region
      %s55 = ssub.s32 128, 128
      %56 = vsyncadd [#allocation3], %s55
      %s58 = sshll.u32 [#allocation2], 4
      %s59 = int_to_ptr.vmem [resolvable:$true] %s58
      %61 = dma.vmem_to_hbm [thread:$0]  %s59, 128, %s3, [#allocation3]
    $region17: #{_batchnorm1d_pallas.1} parent=1 // pred_fallthru
      _
    // Predicated region
    $region18: #{_batchnorm1d_pallas.1} parent=1 // pred_check
      _
    $region19: #{_batchnorm1d_pallas.1} parent=1 // pred_check_branch
      %63 = sbr.rel (0) target = $region21
    $region20: #{_batchnorm1d_pallas.1} parent=1 // pred_region
      %64 = dma.done [#allocation3], 128
    $region21: #{_batchnorm1d_pallas.1} parent=1 // pred_fallthru
      _
    %65 = vsyncpa [#allocation3], 1

</llo_original>
